<compile_context>
chip_gen: v7x
topology: tpu7x:2x2x1
jax: 0.10.0
libtpu: 0.0.40
codegen_flags: <defaults>
</compile_context>

<pallas_src>
import functools

import jax
import jax.numpy as jnp
import numpy as np
from jax.experimental import pallas as pl
from jax.experimental.pallas import tpu as pltpu


def _chamfer_kernel(v_ref, l_ref, out_ref, minl_ref, rowsum_ref, *, inv_nv, inv_nl):
    """One (batch tile, Nv tile) step.

    v_ref:     (tB, tNv, D)  video tile (input dtype)
    l_ref:     (tB, Nl, D)   full language features for this batch tile
    out_ref:   (tB, 1)       per-batch chamfer distance (written at last Nv tile)
    minl_ref:  (tB, Nl) f32  running min over Nv per language token
    rowsum_ref:(tB, 1)  f32  running sum over video rows of min-over-Nl
    """
    k = pl.program_id(1)

    @pl.when(k == 0)
    def _init():
        minl_ref[...] = jnp.full_like(minl_ref, jnp.inf)
        rowsum_ref[...] = jnp.zeros_like(rowsum_ref)

    x = v_ref[...]                       # (tB, tNv, D) keep input dtype for MXU
    y = l_ref[...]                       # (tB, Nl, D)
    xf = x.astype(jnp.float32)
    yf = y.astype(jnp.float32)

    # Squared norms (f32 on the VPU).
    a = jnp.sum(xf * xf, axis=2)                     # (tB, tNv)   Nv on lanes
    b = jnp.sum(yf * yf, axis=2, keepdims=True)      # (tB, Nl, 1)

    # Lane-dense pairwise distances: larger Nv dimension on the lane axis.
    ab = jnp.einsum("bmd,bnd->bmn", y, x,
                    preferred_element_type=jnp.float32)   # (tB, Nl, tNv) on MXU
    p = (a[:, None, :] - 2.0 * ab) + b                    # (tB, Nl, tNv)

    # clip -> language direction: min over Nv (lane reduce), running min
    # across Nv tiles per language token.
    minl_ref[...] = jnp.minimum(minl_ref[...], jnp.min(p, axis=2))

    # language -> clip direction: min over Nl per video row (Nl is complete in
    # every tile), accumulate the row-sum across Nv tiles.
    rowsum_ref[...] += jnp.sum(jnp.min(p, axis=1), axis=1, keepdims=True)

    @pl.when(k == pl.num_programs(1) - 1)
    def _finalize():
        lang_to_clip = rowsum_ref[...] * inv_nv                                # (tB, 1)
        clip_to_lang = jnp.sum(minl_ref[...], axis=1, keepdims=True) * inv_nl  # (tB, 1)
        out_ref[...] = (lang_to_clip + clip_to_lang).astype(out_ref.dtype)


def _pick_batch_tile(batch, cap=8):
    # Leading dim of the 3-D input blocks is unconstrained, but the (tB, 1)
    # output block needs tB == B or a multiple of 8.
    if batch <= cap:
        return batch
    for t in range(min(cap, batch), 7, -1):
        if t % 8 == 0 and batch % t == 0:
            return t
    return batch


def _pick_nv_tile(nv, cap=512):
    # Second-to-last dim of the video block must be a multiple of 8 or == Nv.
    if nv <= cap:
        return nv
    for t in range(cap, 7, -1):
        if t % 8 == 0 and nv % t == 0:
            return t
    return nv


def chamfer_distance(video_feat, lang_feat, *, tile_b=None, tile_nv=None):
    """video_feat: (B, Nv, D), lang_feat: (B, Nl, D) -> (B,) chamfer distances."""
    B, Nv, D = video_feat.shape
    B2, Nl, D2 = lang_feat.shape
    assert B == B2 and D == D2, "batch / feature dims must match"

    if tile_b is None:
        tile_b = _pick_batch_tile(B)
    if tile_nv is None:
        tile_nv = _pick_nv_tile(Nv)
    assert B % tile_b == 0 and Nv % tile_nv == 0

    grid = (B // tile_b, Nv // tile_nv)  # reduction (Nv) axis last, by convention

    kernel = functools.partial(
        _chamfer_kernel, inv_nv=float(1.0 / Nv), inv_nl=float(1.0 / Nl))

    out = pl.pallas_call(
        kernel,
        out_shape=jax.ShapeDtypeStruct((B, 1), jnp.float32),
        grid_spec=pltpu.PrefetchScalarGridSpec(
            num_scalar_prefetch=0,
            grid=grid,
            in_specs=[
                pl.BlockSpec((tile_b, tile_nv, D), lambda b, k: (b, k, 0)),
                pl.BlockSpec((tile_b, Nl, D), lambda b, k: (b, 0, 0)),
            ],
            out_specs=pl.BlockSpec((tile_b, 1), lambda b, k: (b, 0)),
            scratch_shapes=[
                pltpu.VMEM((tile_b, Nl), jnp.float32),  # running min over Nv
                pltpu.VMEM((tile_b, 1), jnp.float32),   # running row-min sum
            ],
        ),
        compiler_params=pltpu.CompilerParams(
            dimension_semantics=("parallel", "arbitrary")),
    )(video_feat, lang_feat)
    return out[:, 0]


def _reference(video_feat, lang_feat):
    """Pure-JAX mirror of the PyTorch ChamferDistance module."""
    x = video_feat.astype(jnp.float32)
    y = lang_feat.astype(jnp.float32)
    a = jnp.sum(x * x, axis=2, keepdims=True)
    b = jnp.sum(y * y, axis=2, keepdims=True)
    ab = jnp.einsum("bnd,bmd->bnm", x, y)
    p = a - 2.0 * ab + jnp.transpose(b, (0, 2, 1))
    nv = p.shape[1]
    nl = p.shape[2]
    language_to_clip = jnp.sum(jnp.min(p, axis=2), axis=1) / nv
    clip_to_language = jnp.sum(jnp.min(p, axis=1), axis=1) / nl
    return language_to_clip + clip_to_language


if __name__ == "__main__":
    B, Nv, Nl, D = 2, 32, 8, 32

    key = jax.random.PRNGKey(0)
    k1, k2 = jax.random.split(key)
    video_feat = jax.random.normal(k1, (B, Nv, D), dtype=jnp.float32)
    lang_feat = jax.random.normal(k2, (B, Nl, D), dtype=jnp.float32)

    # tile_nv=16 -> grid (1, 2): exercises the Nv-tile accumulation path.
    out = chamfer_distance(video_feat, lang_feat, tile_b=B, tile_nv=16)
    out = jax.block_until_ready(out)

    ref = jax.block_until_ready(_reference(video_feat, lang_feat))
    np.testing.assert_allclose(np.asarray(out), np.asarray(ref), rtol=1e-4, atol=1e-4)

    print("KERNEL_OK")
</pallas_src>

<mosaic_0001>
module attributes {stable_mosaic.version = 11 : i64} {
  func.func @_chamfer_kernel(%arg0: i32, %arg1: i32, %arg2: memref<2x16x32xf32, #tpu.memory_space<vmem>>, %arg3: memref<2x8x32xf32, #tpu.memory_space<vmem>>, %arg4: memref<2x1xf32, #tpu.memory_space<vmem>>, %arg5: memref<2x8xf32, #tpu.memory_space<vmem>>, %arg6: memref<2x1xf32, #tpu.memory_space<vmem>>) attributes {dimension_semantics = [#tpu.dimension_semantics<parallel>, #tpu.dimension_semantics<arbitrary>], iteration_bounds = array<i64: 1, 2>, scalar_prefetch = 0 : i64, scratch_operands = 2 : i64, tpu.core_type = #tpu.core_type<tc>, window_params = [{transform_indices = @transform_0, window_bounds = array<i64: 2, 16, 32>}, {transform_indices = @transform_1, window_bounds = array<i64: 2, 8, 32>}, {transform_indices = @transform_2, window_bounds = array<i64: 2, 1>}]} {
    %c0_i32 = arith.constant 0 : i32
    %0 = arith.cmpi eq, %arg1, %c0_i32 : i32
    %1 = arith.extui %0 : i1 to i32
    %c0_i32_0 = arith.constant 0 : i32
    %2 = arith.cmpi ne, %1, %c0_i32_0 : i32
    scf.if %2 {
      %cst_21 = arith.constant 0x7F800000 : f32
      %31 = vector.broadcast %cst_21 : f32 to vector<2x8xf32>
      %c0_22 = arith.constant 0 : index
      %c0_23 = arith.constant 0 : index
      %32 = vector.load %arg5[%c0_22, %c0_23] : memref<2x8xf32, #tpu.memory_space<vmem>>, vector<2x8xf32>
      tpu.vector_store %arg5[%c0_22, %c0_23], %31 {strides = array<i32>} : memref<2x8xf32, #tpu.memory_space<vmem>>, vector<2x8xf32>,
      %cst_24 = arith.constant 0.000000e+00 : f32
      %33 = vector.broadcast %cst_24 : f32 to vector<2x1xf32>
      %c0_25 = arith.constant 0 : index
      %c0_26 = arith.constant 0 : index
      %34 = vector.load %arg6[%c0_25, %c0_26] : memref<2x1xf32, #tpu.memory_space<vmem>>, vector<2x1xf32>
      tpu.vector_store %arg6[%c0_25, %c0_26], %33 {strides = array<i32>} : memref<2x1xf32, #tpu.memory_space<vmem>>, vector<2x1xf32>,
    } else {
    }
    %c0 = arith.constant 0 : index
    %c0_1 = arith.constant 0 : index
    %c0_2 = arith.constant 0 : index
    %3 = vector.load %arg2[%c0, %c0_1, %c0_2] : memref<2x16x32xf32, #tpu.memory_space<vmem>>, vector<2x16x32xf32>
    %c0_3 = arith.constant 0 : index
    %c0_4 = arith.constant 0 : index
    %c0_5 = arith.constant 0 : index
    %4 = vector.load %arg3[%c0_3, %c0_4, %c0_5] : memref<2x8x32xf32, #tpu.memory_space<vmem>>, vector<2x8x32xf32>
    %5 = arith.mulf %3, %3 : vector<2x16x32xf32>
    %cst = arith.constant dense<0.000000e+00> : vector<2x16xf32>
    %6 = vector.multi_reduction <add>, %5, %cst [2] : vector<2x16x32xf32> to vector<2x16xf32>
    %7 = arith.mulf %4, %4 : vector<2x8x32xf32>
    %cst_6 = arith.constant dense<0.000000e+00> : vector<2x8xf32>
    %8 = vector.multi_reduction <add>, %7, %cst_6 [2] : vector<2x8x32xf32> to vector<2x8xf32>
    %9 = vector.shape_cast %8 : vector<2x8xf32> to vector<2x8x1xf32>
    "tpu.trace_start"() <{level = 10 : i32, message = "bmd,bnd->bmn"}> : () -> ()
    %cst_7 = arith.constant dense<0.000000e+00> : vector<2x8x16xf32>
    %10 = tpu.matmul %4, %3, %cst_7 {dimension_numbers = #tpu.dot_dimension_numbers<[2], [2], [1], [1], [0, 0, 0, 1, 1, 1], [0], [0]>} : vector<2x8x32xf32>, vector<2x16x32xf32>, vector<2x8x16xf32> -> vector<2x8x16xf32>
    "tpu.trace_stop"() : () -> ()
    %11 = vector.shape_cast %6 : vector<2x16xf32> to vector<2x1x16xf32>
    %cst_8 = arith.constant 2.000000e+00 : f32
    %12 = vector.broadcast %cst_8 : f32 to vector<2x8x16xf32>
    %13 = arith.mulf %12, %10 : vector<2x8x16xf32>
    %14 = vector.broadcast %11 : vector<2x1x16xf32> to vector<2x8x16xf32>
    %15 = arith.subf %14, %13 : vector<2x8x16xf32>
    %16 = vector.broadcast %9 : vector<2x8x1xf32> to vector<2x8x16xf32>
    %17 = arith.addf %15, %16 : vector<2x8x16xf32>
    %c0_9 = arith.constant 0 : index
    %c0_10 = arith.constant 0 : index
    %18 = vector.load %arg5[%c0_9, %c0_10] : memref<2x8xf32, #tpu.memory_space<vmem>>, vector<2x8xf32>
    %cst_11 = arith.constant dense<0x7F800000> : vector<2x8xf32>
    %19 = vector.multi_reduction <minimumf>, %17, %cst_11 [2] : vector<2x8x16xf32> to vector<2x8xf32>
    %20 = arith.minimumf %18, %19 : vector<2x8xf32>
    %c0_12 = arith.constant 0 : index
    %c0_13 = arith.constant 0 : index
    %21 = vector.load %arg5[%c0_12, %c0_13] : memref<2x8xf32, #tpu.memory_space<vmem>>, vector<2x8xf32>
    tpu.vector_store %arg5[%c0_12, %c0_13], %20 {strides = array<i32>} : memref<2x8xf32, #tpu.memory_space<vmem>>, vector<2x8xf32>,
    %c0_14 = arith.constant 0 : index
    %c0_15 = arith.constant 0 : index
    %22 = vector.load %arg6[%c0_14, %c0_15] : memref<2x1xf32, #tpu.memory_space<vmem>>, vector<2x1xf32>
    %cst_16 = arith.constant dense<0x7F800000> : vector<2x16xf32>
    %23 = vector.multi_reduction <minimumf>, %17, %cst_16 [1] : vector<2x8x16xf32> to vector<2x16xf32>
    %cst_17 = arith.constant dense<0.000000e+00> : vector<2xf32>
    %24 = vector.multi_reduction <add>, %23, %cst_17 [1] : vector<2x16xf32> to vector<2xf32>
    %25 = vector.shape_cast %24 : vector<2xf32> to vector<2x1xf32>
    %26 = arith.addf %22, %25 : vector<2x1xf32>
    %c0_18 = arith.constant 0 : index
    %c0_19 = arith.constant 0 : index
    %27 = vector.load %arg6[%c0_18, %c0_19] : memref<2x1xf32, #tpu.memory_space<vmem>>, vector<2x1xf32>
    tpu.vector_store %arg6[%c0_18, %c0_19], %26 {strides = array<i32>} : memref<2x1xf32, #tpu.memory_space<vmem>>, vector<2x1xf32>,
    %c1_i32 = arith.constant 1 : i32
    %28 = arith.cmpi eq, %arg1, %c1_i32 : i32
    %29 = arith.extui %28 : i1 to i32
    %c0_i32_20 = arith.constant 0 : i32
    %30 = arith.cmpi ne, %29, %c0_i32_20 : i32
    scf.if %30 {
      %c0_21 = arith.constant 0 : index
      %c0_22 = arith.constant 0 : index
      %31 = vector.load %arg6[%c0_21, %c0_22] : memref<2x1xf32, #tpu.memory_space<vmem>>, vector<2x1xf32>
      %cst_23 = arith.constant 3.125000e-02 : f32
      %32 = vector.broadcast %cst_23 : f32 to vector<2x1xf32>
      %33 = arith.mulf %31, %32 : vector<2x1xf32>
      %c0_24 = arith.constant 0 : index
      %c0_25 = arith.constant 0 : index
      %34 = vector.load %arg5[%c0_24, %c0_25] : memref<2x8xf32, #tpu.memory_space<vmem>>, vector<2x8xf32>
      %cst_26 = arith.constant dense<0.000000e+00> : vector<2xf32>
      %35 = vector.multi_reduction <add>, %34, %cst_26 [1] : vector<2x8xf32> to vector<2xf32>
      %36 = vector.shape_cast %35 : vector<2xf32> to vector<2x1xf32>
      %cst_27 = arith.constant 1.250000e-01 : f32
      %37 = vector.broadcast %cst_27 : f32 to vector<2x1xf32>
      %38 = arith.mulf %36, %37 : vector<2x1xf32>
      %39 = arith.addf %33, %38 : vector<2x1xf32>
      %c0_28 = arith.constant 0 : index
      %c0_29 = arith.constant 0 : index
      %40 = vector.load %arg4[%c0_28, %c0_29] : memref<2x1xf32, #tpu.memory_space<vmem>>, vector<2x1xf32>
      tpu.vector_store %arg4[%c0_28, %c0_29], %39 {strides = array<i32>} : memref<2x1xf32, #tpu.memory_space<vmem>>, vector<2x1xf32>,
    } else {
    }
    return
  }
  func.func @transform_0(%arg0: i32, %arg1: i32) -> (i32, i32, i32) {
    %c0_i32 = arith.constant 0 : i32
    %c0_i32_0 = arith.constant 0 : i32
    return %arg0, %arg1, %c0_i32 : i32, i32, i32
  }
  func.func @transform_1(%arg0: i32, %arg1: i32) -> (i32, i32, i32) {
    %c0_i32 = arith.constant 0 : i32
    %c0_i32_0 = arith.constant 0 : i32
    %c0_i32_1 = arith.constant 0 : i32
    return %arg0, %c0_i32, %c0_i32_0 : i32, i32, i32
  }
  func.func @transform_2(%arg0: i32, %arg1: i32) -> (i32, i32) {
    %c0_i32 = arith.constant 0 : i32
    %c0_i32_0 = arith.constant 0 : i32
    return %arg0, %c0_i32 : i32, i32
  }
}

</mosaic_0001>

<llo_original>
// kernel: tpu_custom_call.1
$region0: #{tpu_custom_call.1}
  #allocation0 [shape = 'u32[]', space=smem, size = 0x4, offset = 0x4, fixed_abs, tag = 'smem constant byte address 0x4 - core index']
  #allocation1 [shape = 'u32[144,128]{1,0:T(1,128)}', space=vmem, size = 0x12000, scoped, tag = 'internal scratch']
  #allocation2 [shape = 'f32[2,8]{1,0:T(2,128)}', space=vmem, size = 0x400, scoped, tag = 'scratch operand']
  #allocation3 [shape = 'f32[2,1]{1,0:T(2,128)}', space=vmem, size = 0x400, scoped, tag = 'scratch operand']
  #allocation8 [shape = 's32[]', space=sflag, size = 0x4, offset = 0, fixed_abs, tag = 'sflag constant byte address 0x0 - dummy sync flag']
  %s0 = inlined_call_operand.hbm [shape: f32[2,32,32], index: 0, kind: input, shape index: {}]
  %s1 = inlined_call_operand.hbm [shape: f32[2,8,32], index: 1, kind: input, shape index: {}]
  %s2 = inlined_call_operand.vmem [shape: f32[2,1], index: 2, kind: output, shape index: {}]
  %s3 = sld [smem:[#allocation0]]
  $region57: #{tpu_custom_call.1} parent=0
    _
  %s5 = ssub.s32 1, %s3
  %s6 = scalar_select 0, %s5, %s3
  $region1: #{tpu_custom_call.1} parent=0
    #allocation4 [shape = 'u8[32768]{0}', space=vmem, size = 0x8000, scoped, tag = 'input window, operand 0']
    #allocation5 [shape = 's32[2]{0}', space=sflag, size = 0x8, scoped, tag = 'scoped memory for tpu_custom_call.1']
    #allocation6 [shape = 'u8[8192]{0}', space=vmem, size = 0x2000, scoped, tag = 'input window, operand 1, single buffered']
    #allocation7 [shape = 's32[1]{0}', space=sflag, size = 0x4, scoped, tag = 'scoped memory for tpu_custom_call.1']
    %7 = vsyncpa [#allocation5], 0
    %s8 = scalar_lea.sflag [#allocation5], 1
    %9 = vsyncpa %s8, 0
    %10 = vsyncpa [#allocation7], 0
    loop: start=0, step=1, limit=4
    $region2: #{tpu_custom_call.1} parent=1 // loop_pre_header
      _
    $region3: #{tpu_custom_call.1} parent=1 // loop_header
      %s12 = sphi 0, %s16
      %p13 = scmp.ge.s32.totalorder %s12, 4
      %s19 = sphi 0, %s31
      %s20 = sphi 0, %s27
      %s21 = sphi 0, %s19
      %s22 = sphi 0, %s20
      %s23 = sphi 0, %s21
      %s24 = sphi 0, %s22
      %s36 = sphi 0, %s38
      %s39 = sphi 0, %s36
      %s40 = sphi 0, %s39
      %s56 = sphi 0, %s40
      %s62 = sphi 0, %s64
      %s65 = sphi 0, %s62
      %s66 = sphi 0, %s65
      %s82 = sphi 0, %s66
      %s88 = sphi 0, %s90
      %s91 = sphi 0, %s88
      %s92 = sphi 0, %s91
      %s108 = sphi 0, %s92
    $region4: #{tpu_custom_call.1} parent=1 // loop_header_branch
      %15 = sbr.rel (%p13) target = $region8
    $region5: #{tpu_custom_call.1} parent=1 // loop_body
      %s17 = ssub.s32 %s12, 1
      %s18 = ssub.s32 %s12, 2
      %s25 = sadd.s32 1, %s20
      %p26 = scmp.ge.s32.totalorder %s25, 2
      %s27 = scalar_select %p26, 0, %s25
      %s28 = sadd.s32 1, %s19
      %s29 = scalar_select %p26, %s28, %s19
      %p30 = scmp.ge.s32.totalorder %s29, 1
      %s31 = scalar_select %p30, 0, %s29
      %s32 = ssub.s32 %s19, %s31
      %s33 = ssub.s32 %s20, %s27
      %s34 = sor.u32 %s32, %s33
      %p35 = scmp.eq.s32.totalorder %s34, 0
      %s37 = sadd.s32 %s36, 1
      %s38 = scalar_select %p35, %s36, %s37
      %p41 = pneg %p35
      %p42 = scmp.eq.s32.totalorder %s12, 1
      %p43 = por %p41, %p42
      %p44 = scmp.ne.s32.totalorder %s36, %s39
      %p45 = scmp.eq.s32.totalorder %s12, 0
      %p46 = por %p44, %p45
      %p47 = scmp.ne.s32.totalorder %s36, %s39
      %p48 = scmp.eq.s32.totalorder %s17, 1
      %p49 = por %p47, %p48
      %p50 = scmp.ne.s32.totalorder %s39, %s40
      %p51 = scmp.eq.s32.totalorder %s17, 0
      %p52 = por %p50, %p51
      %p53 = scmp.ne.s32.totalorder %s39, %s40
      %p54 = scmp.eq.s32.totalorder %s18, 1
      %p55 = por %p53, %p54
      %p57 = scmp.ne.s32.totalorder %s40, %s56
      %p58 = scmp.eq.s32.totalorder %s18, 0
      %p59 = por %p57, %p58
      %s60 = ssub.s32 %s19, %s31
      %p61 = scmp.eq.s32.totalorder %s60, 0
      %s63 = sadd.s32 %s62, 1
      %s64 = scalar_select %p61, %s62, %s63
      %p67 = pneg %p61
      %p68 = scmp.eq.s32.totalorder %s12, 1
      %p69 = por %p67, %p68
      %p70 = scmp.ne.s32.totalorder %s62, %s65
      %p71 = scmp.eq.s32.totalorder %s12, 0
      %p72 = por %p70, %p71
      %p73 = scmp.ne.s32.totalorder %s62, %s65
      %p74 = scmp.eq.s32.totalorder %s17, 1
      %p75 = por %p73, %p74
      %p76 = scmp.ne.s32.totalorder %s65, %s66
      %p77 = scmp.eq.s32.totalorder %s17, 0
      %p78 = por %p76, %p77
      %p79 = scmp.ne.s32.totalorder %s65, %s66
      %p80 = scmp.eq.s32.totalorder %s18, 1
      %p81 = por %p79, %p80
      %p83 = scmp.ne.s32.totalorder %s66, %s82
      %p84 = scmp.eq.s32.totalorder %s18, 0
      %p85 = por %p83, %p84
      %s86 = ssub.s32 %s19, %s31
      %p87 = scmp.eq.s32.totalorder %s86, 0
      %s89 = sadd.s32 %s88, 1
      %s90 = scalar_select %p87, %s88, %s89
      %p93 = pneg %p87
      %p94 = scmp.eq.s32.totalorder %s12, 1
      %p95 = por %p93, %p94
      %p96 = scmp.ne.s32.totalorder %s88, %s91
      %p97 = scmp.eq.s32.totalorder %s12, 0
      %p98 = por %p96, %p97
      %p99 = scmp.ne.s32.totalorder %s88, %s91
      %p100 = scmp.eq.s32.totalorder %s17, 1
      %p101 = por %p99, %p100
      %p102 = scmp.ne.s32.totalorder %s91, %s92
      %p103 = scmp.eq.s32.totalorder %s17, 0
      %p104 = por %p102, %p103
      %p105 = scmp.ne.s32.totalorder %s91, %s92
      %p106 = scmp.eq.s32.totalorder %s18, 1
      %p107 = por %p105, %p106
      %p109 = scmp.ne.s32.totalorder %s92, %s108
      %p110 = scmp.eq.s32.totalorder %s18, 0
      %p111 = por %p109, %p110
      %p112 = scmp.le.s32.totalorder 1, %s12
      %p113 = scmp.lt.s32.totalorder %s12, 3
      %p114 = pnand %p112, %p113
      %p115 = pneg %p114
      // Predicated region
      $region9: #{tpu_custom_call.1} parent=5 // pred_check
        _
      $region10: #{tpu_custom_call.1} parent=5 // pred_check_branch
        %117 = sbr.rel (%p114) target = $region12
      $region11: #{tpu_custom_call.1} parent=5 // pred_region
        %s118 = ssub.s32 %s12, 1
        // Predicated region
        $region13: #{tpu_custom_call.1} parent=11 // pred_check
          %p119 = pneg %p78
        $region14: #{tpu_custom_call.1} parent=11 // pred_check_branch
          %121 = sbr.rel (%p119) target = $region16
        $region15: #{tpu_custom_call.1} parent=11 // pred_region
          %s122 = smul.u32 2, %s21
          %s124 = ssub.s32 256, 256
          %125 = vsyncadd [#allocation7], %s124
          %s126 = smul.addr %s122, 128
          %s127 = scalar_lea.hbm %s1, %s126
          %s128 = sshll.u32 [#allocation6], 4
          %s129 = int_to_ptr.vmem [resolvable:$true] %s128
          %134 = dma.hbm_to_vmem [thread:$0]  %s127, 256, %s129, [#allocation7], 128, 128, 8
        $region16: #{tpu_custom_call.1} parent=11 // pred_fallthru
          _
      $region12: #{tpu_custom_call.1} parent=5 // pred_fallthru
        _
      %p135 = scmp.lt.s32.totalorder %s12, 2
      // Predicated region
      $region17: #{tpu_custom_call.1} parent=5 // pred_check
        %p136 = pneg %p135
      $region18: #{tpu_custom_call.1} parent=5 // pred_check_branch
        %138 = sbr.rel (%p136) target = $region20
      $region19: #{tpu_custom_call.1} parent=5 // pred_region
        // Predicated region
        $region21: #{tpu_custom_call.1} parent=19 // pred_check
          %p139 = pneg %p46
        $region22: #{tpu_custom_call.1} parent=19 // pred_check_branch
          %141 = sbr.rel (%p139) target = $region24
        $region23: #{tpu_custom_call.1} parent=19 // pred_region
          #allocation9 [shape = 'u32[6]{0}', space=smem, size = 0x18, scoped, tag = 'DMA stride descriptor']
          %s142 = sand.u32 %s36, 1
          %s143 = scalar_lea.sflag [#allocation5], %s142
          %s144 = sand.u32 %s36, 1
          %s145 = smul.addr %s144, 32
          %s146 = scalar_lea.vmem [#allocation4], %s145
          %s147 = smul.u32 2, %s19
          %s148 = smul.u32 2, %s20
          %s150 = ssub.s32 512, 512
          %151 = vsyncadd %s143, %s150
          %s152 = smul.addr %s147, 4
          %s153 = sadd.s32 %s148, %s152
          %s154 = smul.addr %s153, 128
          %s155 = scalar_lea.hbm %s0, %s154
          %s157 = sshll.u32 1, 14
          %s158 = sxor.u32 4294967295, %s157
          %s160 = sld [smem:[#allocation0]]
          %s161 = sadd.s32 2, %s160
          %s163 = sshll.u32 7, 26
          %s164 = sxor.u32 4294967295, %s163
          %s165 = sand.u32 0, %s164
          %s166 = sshll.u32 %s161, 26
          %s167 = sor.u32 %s165, %s166
          %s168 = sshll.u32 %s146, 4
          %s169 = int_to_ptr.vmem [resolvable:$true] %s168
          %175 = sst [smem:[#allocation9]] 512
          %s176 = scalar_lea.smem [#allocation9], 1
          %177 = sst [smem:[%s176]] 256
          %s178 = scalar_lea.smem [#allocation9], 2
          %179 = sst [smem:[%s178]] 2
          %s180 = scalar_lea.smem [#allocation9], 3
          %181 = sst [smem:[%s180]] 128
          %s182 = scalar_lea.smem [#allocation9], 4
          %183 = sst [smem:[%s182]] 128
          %s184 = scalar_lea.smem [#allocation9], 5
          %185 = sst [smem:[%s184]] 8
          %187 = dma.general %s155, 512, %s169, %s143, [#allocation8], [#allocation9], %s167, 0
        $region24: #{tpu_custom_call.1} parent=19 // pred_fallthru
          _
      $region20: #{tpu_custom_call.1} parent=5 // pred_fallthru
        _
      %p188 = scmp.le.s32.totalorder 1, %s12
      %p189 = scmp.lt.s32.totalorder %s12, 3
      %p190 = pnand %p188, %p189
      %p191 = pneg %p190
      // Predicated region
      $region25: #{tpu_custom_call.1} parent=5 // pred_check
        _
      $region26: #{tpu_custom_call.1} parent=5 // pred_check_branch
        %193 = sbr.rel (%p190) target = $region28
      $region27: #{tpu_custom_call.1} parent=5 // pred_region
        %s194 = ssub.s32 %s12, 1
        %s195 = sand.u32 %s39, 1
        %s196 = scalar_lea.sflag [#allocation5], %s195
        %s197 = sand.u32 %s39, 1
        %s198 = smul.addr %s197, 32
        %s199 = scalar_lea.vmem [#allocation4], %s198
        // Predicated region
        $region29: #{tpu_custom_call.1} parent=27 // pred_check
          %p200 = pneg %p52
        $region30: #{tpu_custom_call.1} parent=27 // pred_check_branch
          %202 = sbr.rel (%p200) target = $region32
        $region31: #{tpu_custom_call.1} parent=27 // pred_region
          %203 = dma.done %s196, 512
        $region32: #{tpu_custom_call.1} parent=27 // pred_fallthru
          _
        // Predicated region
        $region33: #{tpu_custom_call.1} parent=27 // pred_check
          %p204 = pneg %p78
        $region34: #{tpu_custom_call.1} parent=27 // pred_check_branch
          %206 = sbr.rel (%p204) target = $region36
        $region35: #{tpu_custom_call.1} parent=27 // pred_region
          %207 = dma.done [#allocation7], 256
        $region36: #{tpu_custom_call.1} parent=27 // pred_fallthru
          _
        %s208 = sand.u32 %s39, 1
        %s209 = scalar_lea.sflag [#allocation5], %s208
        %s210 = sand.u32 %s39, 1
        %s211 = smul.addr %s210, 32
        %s212 = scalar_lea.vmem [#allocation4], %s211
        %p213 = pneg %p52
        %p214 = pneg %p49
        %p215 = pneg %p78
        %p216 = pneg %p75
        %p217 = pneg %p104
        %p218 = pneg %p101
        %p219 = scmp.lt.s32.totalorder %s21, 0
        %s220 = scalar_select %p219, %s21, 0
        %s221 = smul.addr %s220, 2
        %s222 = scalar_lea.vmem %s2, %s221
        %s223 = smul.u32 2, %s21
        %s224 = smul.u32 2, %s22
        %s225 = smul.u32 2, %s21
        %p226 = scmp.lt.s32.totalorder %s21, 0
        %s227 = scalar_select %p226, %s21, 0
        %s228 = smul.addr %s227, 2
        %s229 = scalar_lea.vmem %s2, %s228
        %p230 = scmp.eq.s32.totalorder %s22, 0
        // Predicated region
        $region37: #{tpu_custom_call.1} parent=27 // pred_check
          %p231 = pneg %p230
        $region38: #{tpu_custom_call.1} parent=27 // pred_check_branch
          %233 = sbr.rel (%p231) target = $region40
        $region39: #{tpu_custom_call.1} parent=27 // pred_region
          %vm234 = vcmask 58368
          %235 = vst.msk [vmem:[#allocation2] sm:$0x3] %vm234, inf
          %vm236 = vcmask 1024
          %237 = vst.msk [vmem:[#allocation3] sm:$0x3] %vm236, 0.0
        $region40: #{tpu_custom_call.1} parent=27 // pred_fallthru
          _
        %v238 = vld [vmem:[%s199] sm:$0xff]
        %v239 = vld [vmem:[%s199 + $0x8] sm:$0xff]
        %v240 = vld [vmem:[%s199 + $0x10] sm:$0xff]
        %v241 = vld [vmem:[%s199 + $0x18] sm:$0xff]
        %v242 = vld [vmem:[#allocation6] sm:$0xff]
        %v243 = vld [vmem:[#allocation6 + $0x8] sm:$0xff]
        %v244 = vmul.f32 %v238, %v238
        %v245 = vmul.f32 %v239, %v239
        %v246 = vmul.f32 %v240, %v240
        %v247 = vmul.f32 %v241, %v241
        %vm248 = vcmask 261120
        %v249 = vsel %vm248, %v244, 0.0
        %250 = vadd.xlane.f32.xlu0 %v249
        %v251 = vpop.xlane.xlu0 %250
        %v252 = vsel %vm248, %v245, 0.0
        %253 = vadd.xlane.f32.xlu0 %v252
        %v254 = vpop.xlane.xlu0 %253
        %v255 = vsel %vm248, %v246, 0.0
        %256 = vadd.xlane.f32.xlu0 %v255
        %v257 = vpop.xlane.xlu0 %256
        %v258 = vsel %vm248, %v247, 0.0
        %259 = vadd.xlane.f32.xlu0 %v258
        %v260 = vpop.xlane.xlu0 %259
        %v261 = vmul.f32 %v242, %v242
        %v262 = vmul.f32 %v243, %v243
        %v263 = vsel %vm248, %v261, 0.0
        %264 = vadd.xlane.f32.xlu0 %v263
        %v265 = vpop.xlane.xlu0 %264
        %v266 = vsel %vm248, %v262, 0.0
        %267 = vadd.xlane.f32.xlu0 %v266
        %v268 = vpop.xlane.xlu0 %267
        %v270 = vsel %vm248, %v242, 0
        %v273 = vsel %vm248, %v238, 0
        %v276 = vsel %vm248, %v239, 0
        %278 = vmatprep.subr.mxu0 0.0
        %279 = vmatpush1.xpose.msra.mxu0 %v273
        %280 = vmatprep.subr.mxu0 0.0
        %281 = vmatpush1.xpose.msra.mxu0 %v276
        %282 = vmatprep.subr.mxu0 0.0
        %283 = vmatpush1.xpose.msra.mxu0 0.0
        %284 = vmatprep.subr.mxu0 0.0
        %285 = vmatpush1.xpose.msra.mxu0 0.0
        %286 = vmatprep.subr.mxu0 0.0
        %287 = vmatpush1.xpose.msra.mxu0 0.0
        %288 = vmatprep.subr.mxu0 0.0
        %289 = vmatpush1.xpose.msra.mxu0 0.0
        %290 = vmatprep.subr.mxu0 0.0
        %291 = vmatpush1.xpose.msra.mxu0 0.0
        %292 = vmatprep.subr.mxu0 0.0
        %293 = vmatpush1.xpose.msra.mxu0 0.0
        %294 = vmatprep.subr.mxu0 0.0
        %295 = vmatpush1.xpose.msra.mxu0 0.0
        %296 = vmatprep.subr.mxu0 0.0
        %297 = vmatpush1.xpose.msra.mxu0 0.0
        %298 = vmatprep.subr.mxu0 0.0
        %299 = vmatpush1.xpose.msra.mxu0 0.0
        %300 = vmatprep.subr.mxu0 0.0
        %301 = vmatpush1.xpose.msra.mxu0 0.0
        %302 = vmatprep.subr.mxu0 0.0
        %303 = vmatpush1.xpose.msra.mxu0 0.0
        %304 = vmatprep.subr.mxu0 0.0
        %305 = vmatpush1.xpose.msra.mxu0 0.0
        %306 = vmatprep.subr.mxu0 0.0
        %307 = vmatpush1.xpose.msra.mxu0 0.0
        %308 = vmatprep.subr.mxu0 0.0
        %309 = vmatpush1.xpose.msra.mxu0 0.0
        %310 = vmatprep.subr.mxu0 0.0
        %311 = vmatpush1.xpose.msra.mxu0 0.0
        %312 = vmatprep.subr.mxu0 0.0
        %313 = vmatpush1.xpose.msra.mxu0 0.0
        %314 = vmatprep.subr.mxu0 0.0
        %315 = vmatpush1.xpose.msra.mxu0 0.0
        %316 = vmatprep.subr.mxu0 0.0
        %317 = vmatpush1.xpose.msra.mxu0 0.0
        %318 = vmatprep.subr.mxu0 0.0
        %319 = vmatpush1.xpose.msra.mxu0 0.0
        %320 = vmatprep.subr.mxu0 0.0
        %321 = vmatpush1.xpose.msra.mxu0 0.0
        %322 = vmatprep.subr.mxu0 0.0
        %323 = vmatpush1.xpose.msra.mxu0 0.0
        %324 = vmatprep.subr.mxu0 0.0
        %325 = vmatpush1.xpose.msra.mxu0 0.0
        %326 = vmatprep.subr.mxu0 0.0
        %327 = vmatpush1.xpose.msra.mxu0 0.0
        %328 = vmatprep.subr.mxu0 0.0
        %329 = vmatpush1.xpose.msra.mxu0 0.0
        %330 = vmatprep.subr.mxu0 0.0
        %331 = vmatpush1.xpose.msra.mxu0 0.0
        %332 = vmatprep.subr.mxu0 0.0
        %333 = vmatpush1.xpose.msra.mxu0 0.0
        %334 = vmatprep.subr.mxu0 0.0
        %335 = vmatpush1.xpose.msra.mxu0 0.0
        %336 = vmatprep.subr.mxu0 0.0
        %337 = vmatpush1.xpose.msra.mxu0 0.0
        %338 = vmatprep.subr.mxu0 0.0
        %339 = vmatpush1.xpose.msra.mxu0 0.0
        %340 = vmatprep.subr.mxu0 0.0
        %341 = vmatpush1.xpose.msra.mxu0 0.0
        %342 = vmatprep.mubr.f32.mxu0 0.0
        %343 = vmatmul.mubr.f32.gmra.mrb[0].mxu0 %v270
        %v344 = vpop.f32.mrb[0].mxu0
        %v345 = vadd.f32 0.0, %v344
        %v346 = vpop.f32.mrb[0].mxu0
        %347 = vdwg.mxu0
        %v349 = vsel %vm248, %v243, 0
        %v352 = vsel %vm248, %v240, 0
        %v355 = vsel %vm248, %v241, 0
        %357 = vmatprep.subr.mxu0 0.0
        %358 = vmatpush1.xpose.msra.mxu0 %v352
        %359 = vmatprep.subr.mxu0 0.0
        %360 = vmatpush1.xpose.msra.mxu0 %v355
        %361 = vmatprep.subr.mxu0 0.0
        %362 = vmatpush1.xpose.msra.mxu0 0.0
        %363 = vmatprep.subr.mxu0 0.0
        %364 = vmatpush1.xpose.msra.mxu0 0.0
        %365 = vmatprep.subr.mxu0 0.0
        %366 = vmatpush1.xpose.msra.mxu0 0.0
        %367 = vmatprep.subr.mxu0 0.0
        %368 = vmatpush1.xpose.msra.mxu0 0.0
        %369 = vmatprep.subr.mxu0 0.0
        %370 = vmatpush1.xpose.msra.mxu0 0.0
        %371 = vmatprep.subr.mxu0 0.0
        %372 = vmatpush1.xpose.msra.mxu0 0.0
        %373 = vmatprep.subr.mxu0 0.0
        %374 = vmatpush1.xpose.msra.mxu0 0.0
        %375 = vmatprep.subr.mxu0 0.0
        %376 = vmatpush1.xpose.msra.mxu0 0.0
        %377 = vmatprep.subr.mxu0 0.0
        %378 = vmatpush1.xpose.msra.mxu0 0.0
        %379 = vmatprep.subr.mxu0 0.0
        %380 = vmatpush1.xpose.msra.mxu0 0.0
        %381 = vmatprep.subr.mxu0 0.0
        %382 = vmatpush1.xpose.msra.mxu0 0.0
        %383 = vmatprep.subr.mxu0 0.0
        %384 = vmatpush1.xpose.msra.mxu0 0.0
        %385 = vmatprep.subr.mxu0 0.0
        %386 = vmatpush1.xpose.msra.mxu0 0.0
        %387 = vmatprep.subr.mxu0 0.0
        %388 = vmatpush1.xpose.msra.mxu0 0.0
        %389 = vmatprep.subr.mxu0 0.0
        %390 = vmatpush1.xpose.msra.mxu0 0.0
        %391 = vmatprep.subr.mxu0 0.0
        %392 = vmatpush1.xpose.msra.mxu0 0.0
        %393 = vmatprep.subr.mxu0 0.0
        %394 = vmatpush1.xpose.msra.mxu0 0.0
        %395 = vmatprep.subr.mxu0 0.0
        %396 = vmatpush1.xpose.msra.mxu0 0.0
        %397 = vmatprep.subr.mxu0 0.0
        %398 = vmatpush1.xpose.msra.mxu0 0.0
        %399 = vmatprep.subr.mxu0 0.0
        %400 = vmatpush1.xpose.msra.mxu0 0.0
        %401 = vmatprep.subr.mxu0 0.0
        %402 = vmatpush1.xpose.msra.mxu0 0.0
        %403 = vmatprep.subr.mxu0 0.0
        %404 = vmatpush1.xpose.msra.mxu0 0.0
        %405 = vmatprep.subr.mxu0 0.0
        %406 = vmatpush1.xpose.msra.mxu0 0.0
        %407 = vmatprep.subr.mxu0 0.0
        %408 = vmatpush1.xpose.msra.mxu0 0.0
        %409 = vmatprep.subr.mxu0 0.0
        %410 = vmatpush1.xpose.msra.mxu0 0.0
        %411 = vmatprep.subr.mxu0 0.0
        %412 = vmatpush1.xpose.msra.mxu0 0.0
        %413 = vmatprep.subr.mxu0 0.0
        %414 = vmatpush1.xpose.msra.mxu0 0.0
        %415 = vmatprep.subr.mxu0 0.0
        %416 = vmatpush1.xpose.msra.mxu0 0.0
        %417 = vmatprep.subr.mxu0 0.0
        %418 = vmatpush1.xpose.msra.mxu0 0.0
        %419 = vmatprep.subr.mxu0 0.0
        %420 = vmatpush1.xpose.msra.mxu0 0.0
        %421 = vmatprep.mubr.f32.mxu0 0.0
        %422 = vmatmul.mubr.f32.gmra.mrb[0].mxu0 %v349
        %v423 = vpop.f32.mrb[0].mxu0
        %v424 = vadd.f32 0.0, %v423
        %v425 = vpop.f32.mrb[0].mxu0
        %426 = vdwg.mxu0
        %v427 = vmul.f32 %v345, 2.0
        %v428 = vmul.f32 %v424, 2.0
        %v431 = vlaneseq
        %v432 = vshrl.u32 %v431, 7
        %v433 = vsub.s32 0, %v432
        %v434 = vrot.slane %v427, %v433
        %436 = vbcast.lane.b32.xlu0 %v434, 256
        %v437 = vpop.permute.xlu0 %436
        %s439 = sor.u32 256, 8
        %440 = vbcast.lane.b32.xlu0 %v434, %s439
        %v441 = vpop.permute.xlu0 %440
        %v442 = vlaneseq
        %v443 = vshrl.u32 %v442, 7
        %v444 = vsub.s32 1, %v443
        %v445 = vrot.slane %v427, %v444
        %447 = vbcast.lane.b32.xlu0 %v445, 256
        %v448 = vpop.permute.xlu0 %447
        %s450 = sor.u32 256, 8
        %451 = vbcast.lane.b32.xlu0 %v445, %s450
        %v452 = vpop.permute.xlu0 %451
        %v453 = vlaneseq
        %v454 = vshrl.u32 %v453, 7
        %v455 = vsub.s32 2, %v454
        %v456 = vrot.slane %v427, %v455
        %458 = vbcast.lane.b32.xlu0 %v456, 256
        %v459 = vpop.permute.xlu0 %458
        %s461 = sor.u32 256, 8
        %462 = vbcast.lane.b32.xlu0 %v456, %s461
        %v463 = vpop.permute.xlu0 %462
        %v464 = vlaneseq
        %v465 = vshrl.u32 %v464, 7
        %v466 = vsub.s32 3, %v465
        %v467 = vrot.slane %v427, %v466
        %469 = vbcast.lane.b32.xlu0 %v467, 256
        %v470 = vpop.permute.xlu0 %469
        %s472 = sor.u32 256, 8
        %473 = vbcast.lane.b32.xlu0 %v467, %s472
        %v474 = vpop.permute.xlu0 %473
        %v475 = vlaneseq
        %v476 = vshrl.u32 %v475, 7
        %v477 = vsub.s32 4, %v476
        %v478 = vrot.slane %v427, %v477
        %480 = vbcast.lane.b32.xlu0 %v478, 256
        %v481 = vpop.permute.xlu0 %480
        %s483 = sor.u32 256, 8
        %484 = vbcast.lane.b32.xlu0 %v478, %s483
        %v485 = vpop.permute.xlu0 %484
        %v486 = vlaneseq
        %v487 = vshrl.u32 %v486, 7
        %v488 = vsub.s32 5, %v487
        %v489 = vrot.slane %v427, %v488
        %491 = vbcast.lane.b32.xlu0 %v489, 256
        %v492 = vpop.permute.xlu0 %491
        %s494 = sor.u32 256, 8
        %495 = vbcast.lane.b32.xlu0 %v489, %s494
        %v496 = vpop.permute.xlu0 %495
        %v497 = vlaneseq
        %v498 = vshrl.u32 %v497, 7
        %v499 = vsub.s32 6, %v498
        %v500 = vrot.slane %v427, %v499
        %502 = vbcast.lane.b32.xlu0 %v500, 256
        %v503 = vpop.permute.xlu0 %502
        %s505 = sor.u32 256, 8
        %506 = vbcast.lane.b32.xlu0 %v500, %s505
        %v507 = vpop.permute.xlu0 %506
        %v508 = vlaneseq
        %v509 = vshrl.u32 %v508, 7
        %v510 = vsub.s32 7, %v509
        %v511 = vrot.slane %v427, %v510
        %513 = vbcast.lane.b32.xlu0 %v511, 256
        %v514 = vpop.permute.xlu0 %513
        %s516 = sor.u32 256, 8
        %517 = vbcast.lane.b32.xlu0 %v511, %s516
        %v518 = vpop.permute.xlu0 %517
        %v519 = vlaneseq
        %v520 = vshrl.u32 %v519, 7
        %v521 = vsub.s32 0, %v520
        %v522 = vrot.slane %v428, %v521
        %524 = vbcast.lane.b32.xlu0 %v522, 256
        %v525 = vpop.permute.xlu0 %524
        %s527 = sor.u32 256, 8
        %528 = vbcast.lane.b32.xlu0 %v522, %s527
        %v529 = vpop.permute.xlu0 %528
        %v530 = vlaneseq
        %v531 = vshrl.u32 %v530, 7
        %v532 = vsub.s32 1, %v531
        %v533 = vrot.slane %v428, %v532
        %535 = vbcast.lane.b32.xlu0 %v533, 256
        %v536 = vpop.permute.xlu0 %535
        %s538 = sor.u32 256, 8
        %539 = vbcast.lane.b32.xlu0 %v533, %s538
        %v540 = vpop.permute.xlu0 %539
        %v541 = vlaneseq
        %v542 = vshrl.u32 %v541, 7
        %v543 = vsub.s32 2, %v542
        %v544 = vrot.slane %v428, %v543
        %546 = vbcast.lane.b32.xlu0 %v544, 256
        %v547 = vpop.permute.xlu0 %546
        %s549 = sor.u32 256, 8
        %550 = vbcast.lane.b32.xlu0 %v544, %s549
        %v551 = vpop.permute.xlu0 %550
        %v552 = vlaneseq
        %v553 = vshrl.u32 %v552, 7
        %v554 = vsub.s32 3, %v553
        %v555 = vrot.slane %v428, %v554
        %557 = vbcast.lane.b32.xlu0 %v555, 256
        %v558 = vpop.permute.xlu0 %557
        %s560 = sor.u32 256, 8
        %561 = vbcast.lane.b32.xlu0 %v555, %s560
        %v562 = vpop.permute.xlu0 %561
        %v563 = vlaneseq
        %v564 = vshrl.u32 %v563, 7
        %v565 = vsub.s32 4, %v564
        %v566 = vrot.slane %v428, %v565
        %568 = vbcast.lane.b32.xlu0 %v566, 256
        %v569 = vpop.permute.xlu0 %568
        %s571 = sor.u32 256, 8
        %572 = vbcast.lane.b32.xlu0 %v566, %s571
        %v573 = vpop.permute.xlu0 %572
        %v574 = vlaneseq
        %v575 = vshrl.u32 %v574, 7
        %v576 = vsub.s32 5, %v575
        %v577 = vrot.slane %v428, %v576
        %579 = vbcast.lane.b32.xlu0 %v577, 256
        %v580 = vpop.permute.xlu0 %579
        %s582 = sor.u32 256, 8
        %583 = vbcast.lane.b32.xlu0 %v577, %s582
        %v584 = vpop.permute.xlu0 %583
        %v585 = vlaneseq
        %v586 = vshrl.u32 %v585, 7
        %v587 = vsub.s32 6, %v586
        %v588 = vrot.slane %v428, %v587
        %590 = vbcast.lane.b32.xlu0 %v588, 256
        %v591 = vpop.permute.xlu0 %590
        %s593 = sor.u32 256, 8
        %594 = vbcast.lane.b32.xlu0 %v588, %s593
        %v595 = vpop.permute.xlu0 %594
        %v596 = vlaneseq
        %v597 = vshrl.u32 %v596, 7
        %v598 = vsub.s32 7, %v597
        %v599 = vrot.slane %v428, %v598
        %601 = vbcast.lane.b32.xlu0 %v599, 256
        %v602 = vpop.permute.xlu0 %601
        %s604 = sor.u32 256, 8
        %605 = vbcast.lane.b32.xlu0 %v599, %s604
        %v606 = vpop.permute.xlu0 %605
        %v639 = vsub.f32 %v251, %v437
        %v640 = vsub.f32 %v254, %v441
        %v641 = vsub.f32 %v251, %v448
        %v642 = vsub.f32 %v254, %v452
        %v643 = vsub.f32 %v251, %v459
        %v644 = vsub.f32 %v254, %v463
        %v645 = vsub.f32 %v251, %v470
        %v646 = vsub.f32 %v254, %v474
        %v647 = vsub.f32 %v251, %v481
        %v648 = vsub.f32 %v254, %v485
        %v649 = vsub.f32 %v251, %v492
        %v650 = vsub.f32 %v254, %v496
        %v651 = vsub.f32 %v251, %v503
        %v652 = vsub.f32 %v254, %v507
        %v653 = vsub.f32 %v251, %v514
        %v654 = vsub.f32 %v254, %v518
        %v655 = vsub.f32 %v257, %v525
        %v656 = vsub.f32 %v260, %v529
        %v657 = vsub.f32 %v257, %v536
        %v658 = vsub.f32 %v260, %v540
        %v659 = vsub.f32 %v257, %v547
        %v660 = vsub.f32 %v260, %v551
        %v661 = vsub.f32 %v257, %v558
        %v662 = vsub.f32 %v260, %v562
        %v663 = vsub.f32 %v257, %v569
        %v664 = vsub.f32 %v260, %v573
        %v665 = vsub.f32 %v257, %v580
        %v666 = vsub.f32 %v260, %v584
        %v667 = vsub.f32 %v257, %v591
        %v668 = vsub.f32 %v260, %v595
        %v669 = vsub.f32 %v257, %v602
        %v670 = vsub.f32 %v260, %v606
        %v673 = vlaneseq
        %v674 = vshrl.u32 %v673, 7
        %v675 = vsub.s32 0, %v674
        %v676 = vrot.slane %v265, %v675
        %v677 = vlaneseq
        %v678 = vshrl.u32 %v677, 7
        %v679 = vsub.s32 1, %v678
        %v680 = vrot.slane %v265, %v679
        %v681 = vlaneseq
        %v682 = vshrl.u32 %v681, 7
        %v683 = vsub.s32 2, %v682
        %v684 = vrot.slane %v265, %v683
        %v685 = vlaneseq
        %v686 = vshrl.u32 %v685, 7
        %v687 = vsub.s32 3, %v686
        %v688 = vrot.slane %v265, %v687
        %v689 = vlaneseq
        %v690 = vshrl.u32 %v689, 7
        %v691 = vsub.s32 4, %v690
        %v692 = vrot.slane %v265, %v691
        %v693 = vlaneseq
        %v694 = vshrl.u32 %v693, 7
        %v695 = vsub.s32 5, %v694
        %v696 = vrot.slane %v265, %v695
        %v697 = vlaneseq
        %v698 = vshrl.u32 %v697, 7
        %v699 = vsub.s32 6, %v698
        %v700 = vrot.slane %v265, %v699
        %v701 = vlaneseq
        %v702 = vshrl.u32 %v701, 7
        %v703 = vsub.s32 7, %v702
        %v704 = vrot.slane %v265, %v703
        %v705 = vlaneseq
        %v706 = vshrl.u32 %v705, 7
        %v707 = vsub.s32 0, %v706
        %v708 = vrot.slane %v268, %v707
        %v709 = vlaneseq
        %v710 = vshrl.u32 %v709, 7
        %v711 = vsub.s32 1, %v710
        %v712 = vrot.slane %v268, %v711
        %v713 = vlaneseq
        %v714 = vshrl.u32 %v713, 7
        %v715 = vsub.s32 2, %v714
        %v716 = vrot.slane %v268, %v715
        %v717 = vlaneseq
        %v718 = vshrl.u32 %v717, 7
        %v719 = vsub.s32 3, %v718
        %v720 = vrot.slane %v268, %v719
        %v721 = vlaneseq
        %v722 = vshrl.u32 %v721, 7
        %v723 = vsub.s32 4, %v722
        %v724 = vrot.slane %v268, %v723
        %v725 = vlaneseq
        %v726 = vshrl.u32 %v725, 7
        %v727 = vsub.s32 5, %v726
        %v728 = vrot.slane %v268, %v727
        %v729 = vlaneseq
        %v730 = vshrl.u32 %v729, 7
        %v731 = vsub.s32 6, %v730
        %v732 = vrot.slane %v268, %v731
        %v733 = vlaneseq
        %v734 = vshrl.u32 %v733, 7
        %v735 = vsub.s32 7, %v734
        %v736 = vrot.slane %v268, %v735
        %v753 = vadd.f32 %v639, %v676
        %v754 = vadd.f32 %v640, %v676
        %v755 = vadd.f32 %v641, %v680
        %v756 = vadd.f32 %v642, %v680
        %v757 = vadd.f32 %v643, %v684
        %v758 = vadd.f32 %v644, %v684
        %v759 = vadd.f32 %v645, %v688
        %v760 = vadd.f32 %v646, %v688
        %v761 = vadd.f32 %v647, %v692
        %v762 = vadd.f32 %v648, %v692
        %v763 = vadd.f32 %v649, %v696
        %v764 = vadd.f32 %v650, %v696
        %v765 = vadd.f32 %v651, %v700
        %v766 = vadd.f32 %v652, %v700
        %v767 = vadd.f32 %v653, %v704
        %v768 = vadd.f32 %v654, %v704
        %v769 = vadd.f32 %v655, %v708
        %v770 = vadd.f32 %v656, %v708
        %v771 = vadd.f32 %v657, %v712
        %v772 = vadd.f32 %v658, %v712
        %v773 = vadd.f32 %v659, %v716
        %v774 = vadd.f32 %v660, %v716
        %v775 = vadd.f32 %v661, %v720
        %v776 = vadd.f32 %v662, %v720
        %v777 = vadd.f32 %v663, %v724
        %v778 = vadd.f32 %v664, %v724
        %v779 = vadd.f32 %v665, %v728
        %v780 = vadd.f32 %v666, %v728
        %v781 = vadd.f32 %v667, %v732
        %v782 = vadd.f32 %v668, %v732
        %v783 = vadd.f32 %v669, %v736
        %v784 = vadd.f32 %v670, %v736
        %v785 = vld [vmem:[#allocation2] sm:$0x3]
        %818 = vset.pattern.permute.xlu0 0
        %819 = vperm.xlu0 %818, %v753
        %v820 = vpop.permute.xlu0 %819
        %821 = vset.pattern.permute.xlu0 0
        %822 = vperm.xlu0 %821, %v754
        %v823 = vpop.permute.xlu0 %822
        %824 = vset.pattern.permute.xlu0 0
        %825 = vperm.xlu0 %824, %v755
        %v826 = vpop.permute.xlu0 %825
        %827 = vset.pattern.permute.xlu0 0
        %828 = vperm.xlu0 %827, %v756
        %v829 = vpop.permute.xlu0 %828
        %830 = vset.pattern.permute.xlu0 0
        %831 = vperm.xlu0 %830, %v757
        %v832 = vpop.permute.xlu0 %831
        %833 = vset.pattern.permute.xlu0 0
        %834 = vperm.xlu0 %833, %v758
        %v835 = vpop.permute.xlu0 %834
        %836 = vset.pattern.permute.xlu0 0
        %837 = vperm.xlu0 %836, %v759
        %v838 = vpop.permute.xlu0 %837
        %839 = vset.pattern.permute.xlu0 0
        %840 = vperm.xlu0 %839, %v760
        %v841 = vpop.permute.xlu0 %840
        %842 = vset.pattern.permute.xlu0 0
        %843 = vperm.xlu0 %842, %v761
        %v844 = vpop.permute.xlu0 %843
        %845 = vset.pattern.permute.xlu0 0
        %846 = vperm.xlu0 %845, %v762
        %v847 = vpop.permute.xlu0 %846
        %848 = vset.pattern.permute.xlu0 0
        %849 = vperm.xlu0 %848, %v763
        %v850 = vpop.permute.xlu0 %849
        %851 = vset.pattern.permute.xlu0 0
        %852 = vperm.xlu0 %851, %v764
        %v853 = vpop.permute.xlu0 %852
        %854 = vset.pattern.permute.xlu0 0
        %855 = vperm.xlu0 %854, %v765
        %v856 = vpop.permute.xlu0 %855
        %857 = vset.pattern.permute.xlu0 0
        %858 = vperm.xlu0 %857, %v766
        %v859 = vpop.permute.xlu0 %858
        %860 = vset.pattern.permute.xlu0 0
        %861 = vperm.xlu0 %860, %v767
        %v862 = vpop.permute.xlu0 %861
        %863 = vset.pattern.permute.xlu0 0
        %864 = vperm.xlu0 %863, %v768
        %v865 = vpop.permute.xlu0 %864
        %866 = vset.pattern.permute.xlu0 0
        %867 = vperm.xlu0 %866, %v769
        %v868 = vpop.permute.xlu0 %867
        %869 = vset.pattern.permute.xlu0 0
        %870 = vperm.xlu0 %869, %v770
        %v871 = vpop.permute.xlu0 %870
        %872 = vset.pattern.permute.xlu0 0
        %873 = vperm.xlu0 %872, %v771
        %v874 = vpop.permute.xlu0 %873
        %875 = vset.pattern.permute.xlu0 0
        %876 = vperm.xlu0 %875, %v772
        %v877 = vpop.permute.xlu0 %876
        %878 = vset.pattern.permute.xlu0 0
        %879 = vperm.xlu0 %878, %v773
        %v880 = vpop.permute.xlu0 %879
        %881 = vset.pattern.permute.xlu0 0
        %882 = vperm.xlu0 %881, %v774
        %v883 = vpop.permute.xlu0 %882
        %884 = vset.pattern.permute.xlu0 0
        %885 = vperm.xlu0 %884, %v775
        %v886 = vpop.permute.xlu0 %885
        %887 = vset.pattern.permute.xlu0 0
        %888 = vperm.xlu0 %887, %v776
        %v889 = vpop.permute.xlu0 %888
        %890 = vset.pattern.permute.xlu0 0
        %891 = vperm.xlu0 %890, %v777
        %v892 = vpop.permute.xlu0 %891
        %893 = vset.pattern.permute.xlu0 0
        %894 = vperm.xlu0 %893, %v778
        %v895 = vpop.permute.xlu0 %894
        %896 = vset.pattern.permute.xlu0 0
        %897 = vperm.xlu0 %896, %v779
        %v898 = vpop.permute.xlu0 %897
        %899 = vset.pattern.permute.xlu0 0
        %900 = vperm.xlu0 %899, %v780
        %v901 = vpop.permute.xlu0 %900
        %902 = vset.pattern.permute.xlu0 0
        %903 = vperm.xlu0 %902, %v781
        %v904 = vpop.permute.xlu0 %903
        %905 = vset.pattern.permute.xlu0 0
        %906 = vperm.xlu0 %905, %v782
        %v907 = vpop.permute.xlu0 %906
        %908 = vset.pattern.permute.xlu0 0
        %909 = vperm.xlu0 %908, %v783
        %v910 = vpop.permute.xlu0 %909
        %911 = vset.pattern.permute.xlu0 0
        %912 = vperm.xlu0 %911, %v784
        %v913 = vpop.permute.xlu0 %912
        %v914 = vlaneseq
        %v915 = vand.u32 %v914, 127
        %v916 = vlaneseq
        %v917 = vshrl.u32 %v916, 7
        %v918 = vsub.s32 %v915, %v917
        %v919 = vrot.slane %v820, %v918
        %v920 = vadd.s32 %v915, 4294967288
        %v921 = vlaneseq
        %v922 = vshrl.u32 %v921, 7
        %v923 = vsub.s32 %v920, %v922
        %v924 = vrot.slane %v823, %v923
        %vm925 = vcmask 130112
        %v926 = vsel %vm925, %v924, %v919
        %v927 = vlaneseq
        %v928 = vshrl.u32 %v927, 7
        %v929 = vsub.s32 %v915, %v928
        %v930 = vrot.slane %v826, %v929
        %v931 = vlaneseq
        %v932 = vshrl.u32 %v931, 7
        %v933 = vsub.s32 %v920, %v932
        %v934 = vrot.slane %v829, %v933
        %v935 = vsel %vm925, %v934, %v930
        %v936 = vlaneseq
        %v937 = vshrl.u32 %v936, 7
        %v938 = vsub.s32 %v915, %v937
        %v939 = vrot.slane %v832, %v938
        %v940 = vlaneseq
        %v941 = vshrl.u32 %v940, 7
        %v942 = vsub.s32 %v920, %v941
        %v943 = vrot.slane %v835, %v942
        %v944 = vsel %vm925, %v943, %v939
        %v945 = vlaneseq
        %v946 = vshrl.u32 %v945, 7
        %v947 = vsub.s32 %v915, %v946
        %v948 = vrot.slane %v838, %v947
        %v949 = vlaneseq
        %v950 = vshrl.u32 %v949, 7
        %v951 = vsub.s32 %v920, %v950
        %v952 = vrot.slane %v841, %v951
        %v953 = vsel %vm925, %v952, %v948
        %v954 = vlaneseq
        %v955 = vshrl.u32 %v954, 7
        %v956 = vsub.s32 %v915, %v955
        %v957 = vrot.slane %v844, %v956
        %v958 = vlaneseq
        %v959 = vshrl.u32 %v958, 7
        %v960 = vsub.s32 %v920, %v959
        %v961 = vrot.slane %v847, %v960
        %v962 = vsel %vm925, %v961, %v957
        %v963 = vlaneseq
        %v964 = vshrl.u32 %v963, 7
        %v965 = vsub.s32 %v915, %v964
        %v966 = vrot.slane %v850, %v965
        %v967 = vlaneseq
        %v968 = vshrl.u32 %v967, 7
        %v969 = vsub.s32 %v920, %v968
        %v970 = vrot.slane %v853, %v969
        %v971 = vsel %vm925, %v970, %v966
        %v972 = vlaneseq
        %v973 = vshrl.u32 %v972, 7
        %v974 = vsub.s32 %v915, %v973
        %v975 = vrot.slane %v856, %v974
        %v976 = vlaneseq
        %v977 = vshrl.u32 %v976, 7
        %v978 = vsub.s32 %v920, %v977
        %v979 = vrot.slane %v859, %v978
        %v980 = vsel %vm925, %v979, %v975
        %v981 = vlaneseq
        %v982 = vshrl.u32 %v981, 7
        %v983 = vsub.s32 %v915, %v982
        %v984 = vrot.slane %v862, %v983
        %v985 = vlaneseq
        %v986 = vshrl.u32 %v985, 7
        %v987 = vsub.s32 %v920, %v986
        %v988 = vrot.slane %v865, %v987
        %v989 = vsel %vm925, %v988, %v984
        %v990 = vlaneseq
        %v991 = vshrl.u32 %v990, 7
        %v992 = vsub.s32 %v915, %v991
        %v993 = vrot.slane %v868, %v992
        %v994 = vlaneseq
        %v995 = vshrl.u32 %v994, 7
        %v996 = vsub.s32 %v920, %v995
        %v997 = vrot.slane %v871, %v996
        %v998 = vsel %vm925, %v997, %v993
        %v999 = vlaneseq
        %v1000 = vshrl.u32 %v999, 7
        %v1001 = vsub.s32 %v915, %v1000
        %v1002 = vrot.slane %v874, %v1001
        %v1003 = vlaneseq
        %v1004 = vshrl.u32 %v1003, 7
        %v1005 = vsub.s32 %v920, %v1004
        %v1006 = vrot.slane %v877, %v1005
        %v1007 = vsel %vm925, %v1006, %v1002
        %v1008 = vlaneseq
        %v1009 = vshrl.u32 %v1008, 7
        %v1010 = vsub.s32 %v915, %v1009
        %v1011 = vrot.slane %v880, %v1010
        %v1012 = vlaneseq
        %v1013 = vshrl.u32 %v1012, 7
        %v1014 = vsub.s32 %v920, %v1013
        %v1015 = vrot.slane %v883, %v1014
        %v1016 = vsel %vm925, %v1015, %v1011
        %v1017 = vlaneseq
        %v1018 = vshrl.u32 %v1017, 7
        %v1019 = vsub.s32 %v915, %v1018
        %v1020 = vrot.slane %v886, %v1019
        %v1021 = vlaneseq
        %v1022 = vshrl.u32 %v1021, 7
        %v1023 = vsub.s32 %v920, %v1022
        %v1024 = vrot.slane %v889, %v1023
        %v1025 = vsel %vm925, %v1024, %v1020
        %v1026 = vlaneseq
        %v1027 = vshrl.u32 %v1026, 7
        %v1028 = vsub.s32 %v915, %v1027
        %v1029 = vrot.slane %v892, %v1028
        %v1030 = vlaneseq
        %v1031 = vshrl.u32 %v1030, 7
        %v1032 = vsub.s32 %v920, %v1031
        %v1033 = vrot.slane %v895, %v1032
        %v1034 = vsel %vm925, %v1033, %v1029
        %v1035 = vlaneseq
        %v1036 = vshrl.u32 %v1035, 7
        %v1037 = vsub.s32 %v915, %v1036
        %v1038 = vrot.slane %v898, %v1037
        %v1039 = vlaneseq
        %v1040 = vshrl.u32 %v1039, 7
        %v1041 = vsub.s32 %v920, %v1040
        %v1042 = vrot.slane %v901, %v1041
        %v1043 = vsel %vm925, %v1042, %v1038
        %v1044 = vlaneseq
        %v1045 = vshrl.u32 %v1044, 7
        %v1046 = vsub.s32 %v915, %v1045
        %v1047 = vrot.slane %v904, %v1046
        %v1048 = vlaneseq
        %v1049 = vshrl.u32 %v1048, 7
        %v1050 = vsub.s32 %v920, %v1049
        %v1051 = vrot.slane %v907, %v1050
        %v1052 = vsel %vm925, %v1051, %v1047
        %v1053 = vlaneseq
        %v1054 = vshrl.u32 %v1053, 7
        %v1055 = vsub.s32 %v915, %v1054
        %v1056 = vrot.slane %v910, %v1055
        %v1057 = vlaneseq
        %v1058 = vshrl.u32 %v1057, 7
        %v1059 = vsub.s32 %v920, %v1058
        %v1060 = vrot.slane %v913, %v1059
        %v1061 = vsel %vm925, %v1060, %v1056
        %vm1062 = vcmask 1041409
        %v1063 = vsel %vm1062, %v935, %v926
        %vm1064 = vcmask 1042434
        %v1065 = vsel %vm1064, %v944, %v1063
        %vm1066 = vcmask 1043459
        %v1067 = vsel %vm1066, %v953, %v1065
        %vm1068 = vcmask 1044484
        %v1069 = vsel %vm1068, %v962, %v1067
        %vm1070 = vcmask 1045509
        %v1071 = vsel %vm1070, %v971, %v1069
        %vm1072 = vcmask 1046534
        %v1073 = vsel %vm1072, %v980, %v1071
        %vm1074 = vcmask 1047559
        %v1075 = vsel %vm1074, %v989, %v1073
        %v1076 = vsel %vm1062, %v1007, %v998
        %v1077 = vsel %vm1064, %v1016, %v1076
        %v1078 = vsel %vm1066, %v1025, %v1077
        %v1079 = vsel %vm1068, %v1034, %v1078
        %v1080 = vsel %vm1070, %v1043, %v1079
        %v1081 = vsel %vm1072, %v1052, %v1080
        %v1082 = vsel %vm1074, %v1061, %v1081
        %vm1085 = vcmask 130048
        %v1086 = vsel %vm1085, %v1075, inf
        %1087 = vmin.xlane.f32.xlu0 %v1086
        %v1088 = vpop.xlane.xlu0 %1087
        %v1089 = vsel %vm1085, %v1082, inf
        %1090 = vmin.xlane.f32.xlu0 %v1089
        %v1091 = vpop.xlane.xlu0 %1090
        %v1094 = vlaneseq
        %v1095 = vshrl.u32 %v1094, 7
        %v1096 = vsub.s32 %v915, %v1095
        %v1097 = vrot.slane %v1088, %v1096
        %v1098 = vlaneseq
        %v1099 = vshrl.u32 %v1098, 7
        %v1100 = vsub.s32 %v915, %v1099
        %v1101 = vrot.slane %v1091, %v1100
        %v1102 = vsel %vm1062, %v1101, %v1097
        %v1104 = vmin.f32 %v785, %v1102
        %vm1105 = vcmask 58368
        %1106 = vst.msk [vmem:[#allocation2] sm:$0x3] %vm1105, %v1104
        %v1107 = vld [vmem:[#allocation3] sm:$0x3]
        %vm1108 = vcmask 7168
        %v1109 = vsel %vm1108, %v753, inf
        %v1110 = vsel %vm1108, %v755, inf
        %v1111 = vmin.f32 %v1109, %v1110
        %v1112 = vsel %vm1108, %v757, inf
        %v1113 = vmin.f32 %v1111, %v1112
        %v1114 = vsel %vm1108, %v759, inf
        %v1115 = vmin.f32 %v1113, %v1114
        %v1116 = vsel %vm1108, %v761, inf
        %v1117 = vmin.f32 %v1115, %v1116
        %v1118 = vsel %vm1108, %v763, inf
        %v1119 = vmin.f32 %v1117, %v1118
        %v1120 = vsel %vm1108, %v765, inf
        %v1121 = vmin.f32 %v1119, %v1120
        %v1122 = vsel %vm1108, %v767, inf
        %v1123 = vmin.f32 %v1121, %v1122
        %v1124 = vsel %vm1108, %v754, inf
        %v1125 = vsel %vm1108, %v756, inf
        %v1126 = vmin.f32 %v1124, %v1125
        %v1127 = vsel %vm1108, %v758, inf
        %v1128 = vmin.f32 %v1126, %v1127
        %v1129 = vsel %vm1108, %v760, inf
        %v1130 = vmin.f32 %v1128, %v1129
        %v1131 = vsel %vm1108, %v762, inf
        %v1132 = vmin.f32 %v1130, %v1131
        %v1133 = vsel %vm1108, %v764, inf
        %v1134 = vmin.f32 %v1132, %v1133
        %v1135 = vsel %vm1108, %v766, inf
        %v1136 = vmin.f32 %v1134, %v1135
        %v1137 = vsel %vm1108, %v768, inf
        %v1138 = vmin.f32 %v1136, %v1137
        %v1139 = vsel %vm1108, %v769, inf
        %v1140 = vsel %vm1108, %v771, inf
        %v1141 = vmin.f32 %v1139, %v1140
        %v1142 = vsel %vm1108, %v773, inf
        %v1143 = vmin.f32 %v1141, %v1142
        %v1144 = vsel %vm1108, %v775, inf
        %v1145 = vmin.f32 %v1143, %v1144
        %v1146 = vsel %vm1108, %v777, inf
        %v1147 = vmin.f32 %v1145, %v1146
        %v1148 = vsel %vm1108, %v779, inf
        %v1149 = vmin.f32 %v1147, %v1148
        %v1150 = vsel %vm1108, %v781, inf
        %v1151 = vmin.f32 %v1149, %v1150
        %v1152 = vsel %vm1108, %v783, inf
        %v1153 = vmin.f32 %v1151, %v1152
        %v1154 = vsel %vm1108, %v770, inf
        %v1155 = vsel %vm1108, %v772, inf
        %v1156 = vmin.f32 %v1154, %v1155
        %v1157 = vsel %vm1108, %v774, inf
        %v1158 = vmin.f32 %v1156, %v1157
        %v1159 = vsel %vm1108, %v776, inf
        %v1160 = vmin.f32 %v1158, %v1159
        %v1161 = vsel %vm1108, %v778, inf
        %v1162 = vmin.f32 %v1160, %v1161
        %v1163 = vsel %vm1108, %v780, inf
        %v1164 = vmin.f32 %v1162, %v1163
        %v1165 = vsel %vm1108, %v782, inf
        %v1166 = vmin.f32 %v1164, %v1165
        %v1167 = vsel %vm1108, %v784, inf
        %v1168 = vmin.f32 %v1166, %v1167
        %1173 = vset.pattern.permute.xlu0 0
        %1174 = vperm.xlu0 %1173, %v1123
        %v1175 = vpop.permute.xlu0 %1174
        %1176 = vset.pattern.permute.xlu0 0
        %1177 = vperm.xlu0 %1176, %v1138
        %v1178 = vpop.permute.xlu0 %1177
        %1179 = vset.pattern.permute.xlu0 0
        %1180 = vperm.xlu0 %1179, %v1153
        %v1181 = vpop.permute.xlu0 %1180
        %1182 = vset.pattern.permute.xlu0 0
        %1183 = vperm.xlu0 %1182, %v1168
        %v1184 = vpop.permute.xlu0 %1183
        %v1185 = vlaneseq
        %v1186 = vshrl.u32 %v1185, 7
        %v1187 = vsub.s32 %v915, %v1186
        %v1188 = vrot.slane %v1175, %v1187
        %v1189 = vlaneseq
        %v1190 = vshrl.u32 %v1189, 7
        %v1191 = vsub.s32 %v920, %v1190
        %v1192 = vrot.slane %v1178, %v1191
        %v1193 = vsel %vm925, %v1192, %v1188
        %v1194 = vlaneseq
        %v1195 = vshrl.u32 %v1194, 7
        %v1196 = vsub.s32 %v915, %v1195
        %v1197 = vrot.slane %v1181, %v1196
        %v1198 = vlaneseq
        %v1199 = vshrl.u32 %v1198, 7
        %v1200 = vsub.s32 %v920, %v1199
        %v1201 = vrot.slane %v1184, %v1200
        %v1202 = vsel %vm925, %v1201, %v1197
        %v1203 = vsel %vm1062, %v1202, %v1193
        %vm1205 = vcmask 123904
        %v1206 = vsel %vm1205, %v1203, 0.0
        %1207 = vadd.xlane.f32.xlu0 %v1206
        %v1208 = vpop.xlane.xlu0 %1207
        %v1209 = vadd.f32 %v1107, %v1208
        %vm1210 = vcmask 1024
        %1211 = vst.msk [vmem:[#allocation3] sm:$0x3] %vm1210, %v1209
        %p1212 = scmp.eq.s32.totalorder %s22, 1
        // Predicated region
        $region41: #{tpu_custom_call.1} parent=27 // pred_check
          %p1213 = pneg %p1212
        $region42: #{tpu_custom_call.1} parent=27 // pred_check_branch
          %1215 = sbr.rel (%p1213) target = $region44
        $region43: #{tpu_custom_call.1} parent=27 // pred_region
          %v1216 = vld [vmem:[#allocation3] sm:$0x3]
          %v1217 = vmul.f32 %v1216, 0.03125
          %v1218 = vld [vmem:[#allocation2] sm:$0x3]
          %v1219 = vsel %vm1105, %v1218, 0.0
          %1220 = vadd.xlane.f32.xlu0 %v1219
          %v1221 = vpop.xlane.xlu0 %1220
          %v1222 = vmul.f32 %v1221, 0.125
          %v1223 = vadd.f32 %v1217, %v1222
          %1224 = vst.msk [vmem:[%s229] sm:$0x3] %vm1210, %v1223
        $region44: #{tpu_custom_call.1} parent=27 // pred_fallthru
          _
        %p1225 = scmp.lt.s32.totalorder %s21, 0
        %s1226 = scalar_select %p1225, %s21, 0
        %s1227 = smul.addr %s1226, 2
        %s1228 = scalar_lea.vmem %s2, %s1227
        // Predicated region
        $region45: #{tpu_custom_call.1} parent=27 // pred_check
          %p1229 = pneg %p101
        $region46: #{tpu_custom_call.1} parent=27 // pred_check_branch
          %1231 = sbr.rel (%p1229) target = $region48
        $region47: #{tpu_custom_call.1} parent=27 // pred_region
          _
        $region48: #{tpu_custom_call.1} parent=27 // pred_fallthru
          _
        // Predicated region
        $region49: #{tpu_custom_call.1} parent=27 // pred_check
          %p1232 = pneg %p101
        $region50: #{tpu_custom_call.1} parent=27 // pred_check_branch
          %1234 = sbr.rel (%p1232) target = $region52
        $region51: #{tpu_custom_call.1} parent=27 // pred_region
          %p1235 = scmp.lt.s32.totalorder %s21, 0
          %s1236 = scalar_select %p1235, %s21, 0
          %s1237 = smul.addr %s1236, 2
          %s1238 = scalar_lea.vmem %s2, %s1237
        $region52: #{tpu_custom_call.1} parent=27 // pred_fallthru
          _
      $region28: #{tpu_custom_call.1} parent=5 // pred_fallthru
        _
      %p1239 = scmp.le.s32.totalorder 2, %s12
      // Predicated region
      $region53: #{tpu_custom_call.1} parent=5 // pred_check
        %p1240 = pneg %p1239
      $region54: #{tpu_custom_call.1} parent=5 // pred_check_branch
        %1242 = sbr.rel (%p1240) target = $region56
      $region55: #{tpu_custom_call.1} parent=5 // pred_region
        %s1243 = ssub.s32 %s12, 2
      $region56: #{tpu_custom_call.1} parent=5 // pred_fallthru
        _
    $region6: #{tpu_custom_call.1} parent=1 // loop_footer
      %s16 = sadd.s32 1, %s12
    $region7: #{tpu_custom_call.1} parent=1 // loop_footer_branch
      %11 = sbr.rel target = $region3
    $region8: #{tpu_custom_call.1} parent=1 // loop_exit
      _
    %1244 = vsyncpa [#allocation5], 1
    %s1245 = scalar_lea.sflag [#allocation5], 1
    %1246 = vsyncpa %s1245, 1
    %1247 = vsyncpa [#allocation7], 1

</llo_original>
